<compile_context>
chip_gen: v5e
topology: v5e:2x2
jax: 0.10.0
libtpu: 0.0.40
codegen_flags: <defaults>
</compile_context>

<pallas_src>
import functools

import jax
import jax.numpy as jnp
from jax import lax
from jax.experimental import pallas as pl
from jax.experimental.pallas import tpu as pltpu


def _round_up(x, m):
    return (x + m - 1) // m * m


def _fused_bigram_kernel(TG, ids_ref, emb_ref, w_ref, b_ref, out_ref, table_ref):
    """Step 0 builds P = softmax(E @ W^T + b) into VMEM; every step gathers TG rows."""
    # ids_ref:   (Np,) int32 in SMEM (scalar prefetch)
    # emb_ref:   (Vr, Ep) bf16 embedding rows (resident, constant index_map)
    # w_ref:     (Vp, Ep) bf16 linear weight (resident)
    # b_ref:     (1, Vp) f32 bias; padded columns hold -1e30
    # out_ref:   (TG, Vp) f32 output block for this grid step
    # table_ref: (Vr, Vp) f32 VMEM scratch, persists across grid steps

    @pl.when(pl.program_id(0) == 0)
    def _build_table():
        logits = lax.dot_general(                      # contract E on both sides
            emb_ref[...], w_ref[...],                  # (no wrapper-side W.T)
            dimension_numbers=(((1,), (1,)), ((), ())),
            preferred_element_type=jnp.float32)        # (Vr, Vp) f32 accumulator
        logits = logits + b_ref[...]
        # Numerically stable softmax in f32 over the lane-dense padded vocab axis.
        m = jnp.max(logits, axis=-1, keepdims=True)
        e = jnp.exp(logits - m)
        s = jnp.sum(e, axis=-1, keepdims=True)
        # Exact divide (NOT approx reciprocal): rows must sum to 1 tightly.
        table_ref[...] = e / s

    # Gather TG table rows from VMEM for this grid step's token ids, then do
    # one lane-dense, unmasked (TG, Vp) store.
    base = pl.program_id(0) * TG
    rows = []
    for g in range(TG):                                # TG is small & static
        row_id = ids_ref[base + g]                     # SMEM scalar read
        rows.append(table_ref[pl.ds(row_id, 1), :])    # (1, Vp) dynamic slice
    out_ref[...] = jnp.concatenate(rows, axis=0)


def make_bigram_forward(emb_table, weight, bias, *, gather_block=8):
    """Hoisted parameter prep; returns jitted forward(tokens) -> (B, T, V) probs."""
    V, E = emb_table.shape
    Vp = _round_up(V, 128)          # lane-dense padded vocab columns
    Vr = _round_up(V, 8)            # sublane-aligned vocab rows
    Ep = _round_up(E, 128)          # MXU-friendly contraction dim
    TG = gather_block               # token ids gathered per grid step (>= 8)

    # One-time prep: bf16 MXU operands (2x throughput, half the resident VMEM),
    # zero padding on rows/E, -1e30 on padded bias columns so they softmax to 0.
    emb_p = jnp.zeros((Vr, Ep), jnp.bfloat16).at[:V, :E].set(
        emb_table.astype(jnp.bfloat16))
    w_p = jnp.zeros((Vp, Ep), jnp.bfloat16).at[:V, :E].set(
        weight.astype(jnp.bfloat16))
    b_p = jnp.full((1, Vp), -1e30, jnp.float32).at[0, :V].set(
        bias.astype(jnp.float32))

    kernel = functools.partial(_fused_bigram_kernel, TG)

    @jax.jit
    def forward(tokens):
        B, T = tokens.shape
        N = B * T
        Np = _round_up(N, TG)
        ids = jnp.zeros((Np,), jnp.int32).at[:N].set(
            tokens.reshape(N).astype(jnp.int32))       # padded ids gather row 0

        probs = pl.pallas_call(
            kernel,
            out_shape=jax.ShapeDtypeStruct((Np, Vp), jnp.float32),
            grid_spec=pltpu.PrefetchScalarGridSpec(
                num_scalar_prefetch=1,                  # ids live in SMEM
                grid=(Np // TG,),
                in_specs=[
                    pl.BlockSpec((Vr, Ep), lambda i, _ids: (0, 0)),  # emb (resident)
                    pl.BlockSpec((Vp, Ep), lambda i, _ids: (0, 0)),  # weight (resident)
                    pl.BlockSpec((1, Vp), lambda i, _ids: (0, 0)),   # bias (resident)
                ],
                out_specs=pl.BlockSpec((TG, Vp), lambda i, _ids: (i, 0)),
                scratch_shapes=[pltpu.VMEM((Vr, Vp), jnp.float32)],  # table P
            ),
            compiler_params=pltpu.CompilerParams(
                # Must be "arbitrary": the VMEM table written at step 0 is read
                # by every later step (megacore-parallel would break it on v7x).
                dimension_semantics=("arbitrary",),
                vmem_limit_bytes=32 * 1024 * 1024),      # fits v7x's 64 MiB
        )(ids, emb_p, w_p, b_p)

        return probs[:N, :V].reshape(B, T, V)

    return forward


if __name__ == "__main__":
    VOCAB, EMB = 32, 32
    B, T = 2, 8

    key = jax.random.PRNGKey(0)
    k_emb, k_w, k_b, k_tok = jax.random.split(key, 4)

    emb_table = jax.random.normal(k_emb, (VOCAB, EMB), dtype=jnp.float32)
    weight = 0.1 * jax.random.normal(k_w, (VOCAB, EMB), dtype=jnp.float32)  # nn.Linear weight
    bias = 0.1 * jax.random.normal(k_b, (VOCAB,), dtype=jnp.float32)
    tokens = jax.random.randint(k_tok, (B, T), 0, VOCAB, dtype=jnp.int32)

    forward = make_bigram_forward(emb_table, weight, bias)
    probs = forward(tokens)
    jax.block_until_ready(probs)

    # Reference using the same bf16-rounded matmul operands (kernel uses bf16
    # MXU inputs with f32 accumulation and an exact f32 softmax).
    emb_q = emb_table.astype(jnp.bfloat16).astype(jnp.float32)
    w_q = weight.astype(jnp.bfloat16).astype(jnp.float32)
    ref = jax.nn.softmax(emb_q[tokens] @ w_q.T + bias, axis=-1)

    assert probs.shape == (B, T, VOCAB)
    assert bool(jnp.allclose(probs, ref, atol=2e-3)), "mismatch vs reference"
    assert bool(jnp.allclose(jnp.sum(probs, axis=-1), 1.0, atol=2e-3)), "rows not normalized"

    print("KERNEL_OK")
</pallas_src>

<mosaic_0001>
module attributes {stable_mosaic.version = 11 : i64} {
  func.func @_fused_bigram_kernel(%arg0: i32, %arg1: memref<16xi32, #tpu.memory_space<smem>>, %arg2: memref<32x128xbf16, #tpu.memory_space<vmem>>, %arg3: memref<128x128xbf16, #tpu.memory_space<vmem>>, %arg4: memref<1x128xf32, #tpu.memory_space<vmem>>, %arg5: memref<8x128xf32, #tpu.memory_space<vmem>>, %arg6: memref<32x128xf32, #tpu.memory_space<vmem>>) attributes {dimension_semantics = [#tpu.dimension_semantics<arbitrary>], iteration_bounds = array<i64: 2>, scalar_prefetch = 1 : i64, scratch_operands = 1 : i64, tpu.core_type = #tpu.core_type<tc>, window_params = [{pipeline_mode = #tpu.pipeline_mode<synchronous>, transform_indices = @transform_0, window_bounds = array<i64: 32, 128>}, {pipeline_mode = #tpu.pipeline_mode<synchronous>, transform_indices = @transform_1, window_bounds = array<i64: 128, 128>}, {pipeline_mode = #tpu.pipeline_mode<synchronous>, transform_indices = @transform_2, window_bounds = array<i64: 1, 128>}, {transform_indices = @transform_3, window_bounds = array<i64: 8, 128>}]} {
    %c0_i32 = arith.constant 0 : i32
    %0 = arith.cmpi eq, %arg0, %c0_i32 : i32
    %1 = arith.extui %0 : i1 to i32
    %c0_i32_0 = arith.constant 0 : i32
    %2 = arith.cmpi ne, %1, %c0_i32_0 : i32
    scf.if %2 {
      %c0_11 = arith.constant 0 : index
      %c0_12 = arith.constant 0 : index
      %46 = vector.load %arg2[%c0_11, %c0_12] : memref<32x128xbf16, #tpu.memory_space<vmem>>, vector<32x128xbf16>
      %c0_13 = arith.constant 0 : index
      %c0_14 = arith.constant 0 : index
      %47 = vector.load %arg3[%c0_13, %c0_14] : memref<128x128xbf16, #tpu.memory_space<vmem>>, vector<128x128xbf16>
      %cst = arith.constant dense<0.000000e+00> : vector<32x128xf32>
      %48 = tpu.matmul %46, %47, %cst {dimension_numbers = #tpu.dot_dimension_numbers<[1], [1], [0], [0], [0, 0, 1, 0], [], []>} : vector<32x128xbf16>, vector<128x128xbf16>, vector<32x128xf32> -> vector<32x128xf32>
      %c0_15 = arith.constant 0 : index
      %c0_16 = arith.constant 0 : index
      %49 = vector.load %arg4[%c0_15, %c0_16] : memref<1x128xf32, #tpu.memory_space<vmem>>, vector<1x128xf32>
      %50 = vector.broadcast %49 : vector<1x128xf32> to vector<32x128xf32>
      %51 = arith.addf %48, %50 : vector<32x128xf32>
      %cst_17 = arith.constant dense<0xFF800000> : vector<32xf32>
      %52 = vector.multi_reduction <maximumf>, %51, %cst_17 [1] : vector<32x128xf32> to vector<32xf32>
      %53 = vector.shape_cast %52 : vector<32xf32> to vector<32x1xf32>
      %54 = vector.broadcast %53 : vector<32x1xf32> to vector<32x128xf32>
      %55 = arith.subf %51, %54 : vector<32x128xf32>
      %56 = math.exp %55 : vector<32x128xf32>
      %cst_18 = arith.constant dense<0.000000e+00> : vector<32xf32>
      %57 = vector.multi_reduction <add>, %56, %cst_18 [1] : vector<32x128xf32> to vector<32xf32>
      %58 = vector.shape_cast %57 : vector<32xf32> to vector<32x1xf32>
      %59 = vector.broadcast %58 : vector<32x1xf32> to vector<32x128xf32>
      %60 = arith.divf %56, %59 : vector<32x128xf32>
      %c0_19 = arith.constant 0 : index
      %c0_20 = arith.constant 0 : index
      %61 = vector.load %arg6[%c0_19, %c0_20] : memref<32x128xf32, #tpu.memory_space<vmem>>, vector<32x128xf32>
      tpu.vector_store %arg6[%c0_19, %c0_20], %60 {strides = array<i32>} : memref<32x128xf32, #tpu.memory_space<vmem>>, vector<32x128xf32>,
    } else {
    }
    %c8_i32 = arith.constant 8 : i32
    %3 = arith.muli %arg0, %c8_i32 : i32
    %c0_i32_1 = arith.constant 0 : i32
    %4 = arith.addi %3, %c0_i32_1 : i32
    %5 = arith.index_cast %4 : i32 to index
    %6 = memref.load %arg1[%5] : memref<16xi32, #tpu.memory_space<smem>>
    %7 = arith.index_cast %6 : i32 to index
    %c0 = arith.constant 0 : index
    %8 = vector.load %arg6[%7, %c0] : memref<32x128xf32, #tpu.memory_space<vmem>>, vector<1x128xf32>
    %c1_i32 = arith.constant 1 : i32
    %9 = arith.addi %3, %c1_i32 : i32
    %10 = arith.index_cast %9 : i32 to index
    %11 = memref.load %arg1[%10] : memref<16xi32, #tpu.memory_space<smem>>
    %12 = arith.index_cast %11 : i32 to index
    %c0_2 = arith.constant 0 : index
    %13 = vector.load %arg6[%12, %c0_2] : memref<32x128xf32, #tpu.memory_space<vmem>>, vector<1x128xf32>
    %c2_i32 = arith.constant 2 : i32
    %14 = arith.addi %3, %c2_i32 : i32
    %15 = arith.index_cast %14 : i32 to index
    %16 = memref.load %arg1[%15] : memref<16xi32, #tpu.memory_space<smem>>
    %17 = arith.index_cast %16 : i32 to index
    %c0_3 = arith.constant 0 : index
    %18 = vector.load %arg6[%17, %c0_3] : memref<32x128xf32, #tpu.memory_space<vmem>>, vector<1x128xf32>
    %c3_i32 = arith.constant 3 : i32
    %19 = arith.addi %3, %c3_i32 : i32
    %20 = arith.index_cast %19 : i32 to index
    %21 = memref.load %arg1[%20] : memref<16xi32, #tpu.memory_space<smem>>
    %22 = arith.index_cast %21 : i32 to index
    %c0_4 = arith.constant 0 : index
    %23 = vector.load %arg6[%22, %c0_4] : memref<32x128xf32, #tpu.memory_space<vmem>>, vector<1x128xf32>
    %c4_i32 = arith.constant 4 : i32
    %24 = arith.addi %3, %c4_i32 : i32
    %25 = arith.index_cast %24 : i32 to index
    %26 = memref.load %arg1[%25] : memref<16xi32, #tpu.memory_space<smem>>
    %27 = arith.index_cast %26 : i32 to index
    %c0_5 = arith.constant 0 : index
    %28 = vector.load %arg6[%27, %c0_5] : memref<32x128xf32, #tpu.memory_space<vmem>>, vector<1x128xf32>
    %c5_i32 = arith.constant 5 : i32
    %29 = arith.addi %3, %c5_i32 : i32
    %30 = arith.index_cast %29 : i32 to index
    %31 = memref.load %arg1[%30] : memref<16xi32, #tpu.memory_space<smem>>
    %32 = arith.index_cast %31 : i32 to index
    %c0_6 = arith.constant 0 : index
    %33 = vector.load %arg6[%32, %c0_6] : memref<32x128xf32, #tpu.memory_space<vmem>>, vector<1x128xf32>
    %c6_i32 = arith.constant 6 : i32
    %34 = arith.addi %3, %c6_i32 : i32
    %35 = arith.index_cast %34 : i32 to index
    %36 = memref.load %arg1[%35] : memref<16xi32, #tpu.memory_space<smem>>
    %37 = arith.index_cast %36 : i32 to index
    %c0_7 = arith.constant 0 : index
    %38 = vector.load %arg6[%37, %c0_7] : memref<32x128xf32, #tpu.memory_space<vmem>>, vector<1x128xf32>
    %c7_i32 = arith.constant 7 : i32
    %39 = arith.addi %3, %c7_i32 : i32
    %40 = arith.index_cast %39 : i32 to index
    %41 = memref.load %arg1[%40] : memref<16xi32, #tpu.memory_space<smem>>
    %42 = arith.index_cast %41 : i32 to index
    %c0_8 = arith.constant 0 : index
    %43 = vector.load %arg6[%42, %c0_8] : memref<32x128xf32, #tpu.memory_space<vmem>>, vector<1x128xf32>
    %44 = tpu.concatenate %8, %13, %18, %23, %28, %33, %38, %43 in 0 : vector<1x128xf32>, vector<1x128xf32>, vector<1x128xf32>, vector<1x128xf32>, vector<1x128xf32>, vector<1x128xf32>, vector<1x128xf32>, vector<1x128xf32> -> vector<8x128xf32>
    %c0_9 = arith.constant 0 : index
    %c0_10 = arith.constant 0 : index
    %45 = vector.load %arg5[%c0_9, %c0_10] : memref<8x128xf32, #tpu.memory_space<vmem>>, vector<8x128xf32>
    tpu.vector_store %arg5[%c0_9, %c0_10], %44 {strides = array<i32>} : memref<8x128xf32, #tpu.memory_space<vmem>>, vector<8x128xf32>,
    return
  }
  func.func @transform_0(%arg0: i32, %arg1: memref<16xi32, #tpu.memory_space<smem>>) -> (i32, i32) {
    %c0_i32 = arith.constant 0 : i32
    %c0_i32_0 = arith.constant 0 : i32
    %c0_i32_1 = arith.constant 0 : i32
    return %c0_i32, %c0_i32_0 : i32, i32
  }
  func.func @transform_1(%arg0: i32, %arg1: memref<16xi32, #tpu.memory_space<smem>>) -> (i32, i32) {
    %c0_i32 = arith.constant 0 : i32
    %c0_i32_0 = arith.constant 0 : i32
    %c0_i32_1 = arith.constant 0 : i32
    return %c0_i32, %c0_i32_0 : i32, i32
  }
  func.func @transform_2(%arg0: i32, %arg1: memref<16xi32, #tpu.memory_space<smem>>) -> (i32, i32) {
    %c0_i32 = arith.constant 0 : i32
    %c0_i32_0 = arith.constant 0 : i32
    %c0_i32_1 = arith.constant 0 : i32
    return %c0_i32, %c0_i32_0 : i32, i32
  }
  func.func @transform_3(%arg0: i32, %arg1: memref<16xi32, #tpu.memory_space<smem>>) -> (i32, i32) {
    %c0_i32 = arith.constant 0 : i32
    %c0_i32_0 = arith.constant 0 : i32
    return %arg0, %c0_i32 : i32, i32
  }
}

</mosaic_0001>

<llo_original>
// kernel: forward.1
$region0: #{forward.1}
  #allocation0 [shape = 'u32[]', space=smem, size = 0x4, offset = 0x4, fixed_abs, tag = 'smem constant byte address 0x4 - core index']
  #allocation1 [shape = 'u32[72,128]{1,0:T(1,128)}', space=vmem, size = 0x9000, scoped, tag = 'internal scratch']
  #allocation2 [shape = 'f32[32,128]{1,0:T(8,128)}', space=vmem, size = 0x4000, scoped, tag = 'scratch operand']
  #allocation3 [shape = 's32[1]{0}', space=sflag, size = 0x4, scoped, tag = 'scoped memory for forward.1']
  #allocation4 [shape = 'u8[512]{0}', space=smem, size = 0x200, scoped, tag = 'prefetched SMEM operand 0']
  %s0 = inlined_call_operand.vmem [shape: s32[16], index: 0, kind: input, shape index: {}]
  %s1 = inlined_call_operand.hbm [shape: bf16[32,128], index: 1, kind: input, shape index: {}]
  %s2 = inlined_call_operand.hbm [shape: bf16[128,128], index: 2, kind: input, shape index: {}]
  %s3 = inlined_call_operand.vmem [shape: f32[1,128], index: 3, kind: input, shape index: {}]
  %s4 = inlined_call_operand.vmem [shape: f32[16,128], index: 4, kind: output, shape index: {}]
  %s5 = sld [smem:[#allocation0]]
  $region57: #{forward.1} parent=0
    _
  %s7 = ssub.s32 1, %s5
  %s8 = scalar_select 0, %s7, %s5
  %s10 = sshll.u32 %s0, 4
  %s11 = int_to_ptr.vmem [resolvable:$true] %s10
  %13 = dma.vmem_to_smem %s11, 16, [#allocation4], [#allocation3]
  %15 = dma.done [#allocation3], 16
  %16 = sfence
  $region1: #{forward.1} parent=0
    #allocation5 [shape = 'u8[8192]{0}', space=vmem, size = 0x2000, scoped, tag = 'input window, operand 1, single buffered']
    #allocation6 [shape = 's32[2]{0}', space=sflag, size = 0x8, scoped, tag = 'scoped memory for forward.1']
    #allocation7 [shape = 'u8[32768]{0}', space=vmem, size = 0x8000, scoped, tag = 'input window, operand 2, single buffered']
    #allocation8 [shape = 's32[1]{0}', space=sflag, size = 0x4, scoped, tag = 'scoped memory for forward.1']
    %17 = vsyncpa [#allocation6], 0
    %18 = vsyncpa [#allocation8], 0
    loop: start=0, step=1, limit=4
    $region2: #{forward.1} parent=1 // loop_pre_header
      _
    $region3: #{forward.1} parent=1 // loop_header
      %s20 = sphi 0, %s24
      %p21 = scmp.ge.s32.totalorder %s20, 4
      %s28 = sphi 0, %s28
      %s30 = sphi 0, %s28
      %s31 = sphi 0, %s30
      %s45 = sphi 0, %s31
      %s49 = sphi 0, %s49
      %s51 = sphi 0, %s49
      %s52 = sphi 0, %s51
      %s66 = sphi 0, %s52
      %s70 = sphi 0, %s70
      %s72 = sphi 0, %s70
      %s73 = sphi 0, %s72
      %s87 = sphi 0, %s73
      %s93 = sphi 0, %s95
      %s96 = sphi 0, %s93
      %s97 = sphi 0, %s96
      %s113 = sphi 0, %s97
    $region4: #{forward.1} parent=1 // loop_header_branch
      %23 = sbr.rel (%p21) target = $region8
    $region5: #{forward.1} parent=1 // loop_body
      %s25 = ssub.s32 %s20, 1
      %s26 = ssub.s32 %s20, 2
      %s27 = sadd.s32 %s20, 1
      %s29 = sadd.s32 %s28, 1
      %p32 = scmp.eq.s32.totalorder %s20, 1
      %p33 = scmp.ne.s32.totalorder %s28, %s30
      %p34 = scmp.eq.s32.totalorder %s20, 0
      %p35 = por %p33, %p34
      %p36 = scmp.ne.s32.totalorder %s28, %s30
      %p37 = scmp.eq.s32.totalorder %s25, 1
      %p38 = por %p36, %p37
      %p39 = scmp.ne.s32.totalorder %s30, %s31
      %p40 = scmp.eq.s32.totalorder %s25, 0
      %p41 = por %p39, %p40
      %p42 = scmp.ne.s32.totalorder %s30, %s31
      %p43 = scmp.eq.s32.totalorder %s26, 1
      %p44 = por %p42, %p43
      %p46 = scmp.ne.s32.totalorder %s31, %s45
      %p47 = scmp.eq.s32.totalorder %s26, 0
      %p48 = por %p46, %p47
      %s50 = sadd.s32 %s49, 1
      %p53 = scmp.eq.s32.totalorder %s20, 1
      %p54 = scmp.ne.s32.totalorder %s49, %s51
      %p55 = scmp.eq.s32.totalorder %s20, 0
      %p56 = por %p54, %p55
      %p57 = scmp.ne.s32.totalorder %s49, %s51
      %p58 = scmp.eq.s32.totalorder %s25, 1
      %p59 = por %p57, %p58
      %p60 = scmp.ne.s32.totalorder %s51, %s52
      %p61 = scmp.eq.s32.totalorder %s25, 0
      %p62 = por %p60, %p61
      %p63 = scmp.ne.s32.totalorder %s51, %s52
      %p64 = scmp.eq.s32.totalorder %s26, 1
      %p65 = por %p63, %p64
      %p67 = scmp.ne.s32.totalorder %s52, %s66
      %p68 = scmp.eq.s32.totalorder %s26, 0
      %p69 = por %p67, %p68
      %s71 = sadd.s32 %s70, 1
      %p74 = scmp.eq.s32.totalorder %s20, 1
      %p75 = scmp.ne.s32.totalorder %s70, %s72
      %p76 = scmp.eq.s32.totalorder %s20, 0
      %p77 = por %p75, %p76
      %p78 = scmp.ne.s32.totalorder %s70, %s72
      %p79 = scmp.eq.s32.totalorder %s25, 1
      %p80 = por %p78, %p79
      %p81 = scmp.ne.s32.totalorder %s72, %s73
      %p82 = scmp.eq.s32.totalorder %s25, 0
      %p83 = por %p81, %p82
      %p84 = scmp.ne.s32.totalorder %s72, %s73
      %p85 = scmp.eq.s32.totalorder %s26, 1
      %p86 = por %p84, %p85
      %p88 = scmp.ne.s32.totalorder %s73, %s87
      %p89 = scmp.eq.s32.totalorder %s26, 0
      %p90 = por %p88, %p89
      %s91 = ssub.s32 %s20, %s27
      %p92 = scmp.eq.s32.totalorder %s91, 0
      %s94 = sadd.s32 %s93, 1
      %s95 = scalar_select %p92, %s93, %s94
      %p98 = pneg %p92
      %p99 = scmp.eq.s32.totalorder %s20, 1
      %p100 = por %p98, %p99
      %p101 = scmp.ne.s32.totalorder %s93, %s96
      %p102 = scmp.eq.s32.totalorder %s20, 0
      %p103 = por %p101, %p102
      %p104 = scmp.ne.s32.totalorder %s93, %s96
      %p105 = scmp.eq.s32.totalorder %s25, 1
      %p106 = por %p104, %p105
      %p107 = scmp.ne.s32.totalorder %s96, %s97
      %p108 = scmp.eq.s32.totalorder %s25, 0
      %p109 = por %p107, %p108
      %p110 = scmp.ne.s32.totalorder %s96, %s97
      %p111 = scmp.eq.s32.totalorder %s26, 1
      %p112 = por %p110, %p111
      %p114 = scmp.ne.s32.totalorder %s97, %s113
      %p115 = scmp.eq.s32.totalorder %s26, 0
      %p116 = por %p114, %p115
      %p117 = scmp.le.s32.totalorder 1, %s20
      %p118 = scmp.lt.s32.totalorder %s20, 3
      %p119 = pnand %p117, %p118
      %p120 = pneg %p119
      // Predicated region
      $region9: #{forward.1} parent=5 // pred_check
        _
      $region10: #{forward.1} parent=5 // pred_check_branch
        %122 = sbr.rel (%p119) target = $region12
      $region11: #{forward.1} parent=5 // pred_region
        %s123 = ssub.s32 %s20, 1
        // Predicated region
        $region13: #{forward.1} parent=11 // pred_check
          %p124 = pneg %p41
        $region14: #{forward.1} parent=11 // pred_check_branch
          %126 = sbr.rel (%p124) target = $region16
        $region15: #{forward.1} parent=11 // pred_region
          %128 = vsyncadd [#allocation6], 0
          %s129 = sshll.u32 %s1, 4
          %s130 = int_to_ptr.hbm [resolvable:$true] %s129
          %s131 = sshll.u32 [#allocation5], 4
          %s132 = int_to_ptr.vmem [resolvable:$true] %s131
          %137 = dma.hbm_to_vmem [thread:$0]  %s130, 256, %s132, [#allocation6], 64, 64, 4
        $region16: #{forward.1} parent=11 // pred_fallthru
          _
        // Predicated region
        $region17: #{forward.1} parent=11 // pred_check
          %p138 = pneg %p62
        $region18: #{forward.1} parent=11 // pred_check_branch
          %140 = sbr.rel (%p138) target = $region20
        $region19: #{forward.1} parent=11 // pred_region
          %142 = vsyncadd [#allocation8], 0
          %s143 = sshll.u32 %s2, 4
          %s144 = int_to_ptr.hbm [resolvable:$true] %s143
          %s145 = sshll.u32 [#allocation7], 4
          %s146 = int_to_ptr.vmem [resolvable:$true] %s145
          %151 = dma.hbm_to_vmem [thread:$0]  %s144, 1024, %s146, [#allocation8], 64, 64, 4
        $region20: #{forward.1} parent=11 // pred_fallthru
          _
        // Predicated region
        $region21: #{forward.1} parent=11 // pred_check
          %p152 = pneg %p83
        $region22: #{forward.1} parent=11 // pred_check_branch
          %154 = sbr.rel (%p152) target = $region24
        $region23: #{forward.1} parent=11 // pred_region
          _
        $region24: #{forward.1} parent=11 // pred_fallthru
          _
      $region12: #{forward.1} parent=5 // pred_fallthru
        _
      %p155 = scmp.lt.s32.totalorder %s20, 2
      // Predicated region
      $region25: #{forward.1} parent=5 // pred_check
        %p156 = pneg %p155
      $region26: #{forward.1} parent=5 // pred_check_branch
        %158 = sbr.rel (%p156) target = $region28
      $region27: #{forward.1} parent=5 // pred_region
        _
      $region28: #{forward.1} parent=5 // pred_fallthru
        _
      %p159 = scmp.le.s32.totalorder 1, %s20
      %p160 = scmp.lt.s32.totalorder %s20, 3
      %p161 = pnand %p159, %p160
      %p162 = pneg %p161
      // Predicated region
      $region29: #{forward.1} parent=5 // pred_check
        _
      $region30: #{forward.1} parent=5 // pred_check_branch
        %164 = sbr.rel (%p161) target = $region32
      $region31: #{forward.1} parent=5 // pred_region
        %s165 = ssub.s32 %s20, 1
        // Predicated region
        $region33: #{forward.1} parent=31 // pred_check
          %p166 = pneg %p41
        $region34: #{forward.1} parent=31 // pred_check_branch
          %168 = sbr.rel (%p166) target = $region36
        $region35: #{forward.1} parent=31 // pred_region
          %170 = dma.done [#allocation6], 256
        $region36: #{forward.1} parent=31 // pred_fallthru
          _
        // Predicated region
        $region37: #{forward.1} parent=31 // pred_check
          %p171 = pneg %p62
        $region38: #{forward.1} parent=31 // pred_check_branch
          %173 = sbr.rel (%p171) target = $region40
        $region39: #{forward.1} parent=31 // pred_region
          %175 = dma.done [#allocation8], 1024
        $region40: #{forward.1} parent=31 // pred_fallthru
          _
        %p176 = pneg %p41
        %p177 = pneg %p38
        %p178 = pneg %p62
        %p179 = pneg %p59
        %p180 = pneg %p83
        %p181 = pneg %p80
        %p182 = pneg %p109
        %p183 = pneg %p106
        %p184 = scmp.lt.s32.totalorder %s25, 1
        %s185 = scalar_select %p184, %s25, 1
        %s186 = smul.addr %s185, 8
        %s187 = scalar_lea.vmem %s4, %s186
        %p188 = scmp.lt.s32.totalorder %s25, 1
        %s189 = scalar_select %p188, %s25, 1
        %s190 = smul.addr %s189, 8
        %s191 = scalar_lea.vmem %s4, %s190
        %p192 = scmp.eq.s32.totalorder %s25, 0
        // Predicated region
        $region41: #{forward.1} parent=31 // pred_check
          %p193 = pneg %p192
        $region42: #{forward.1} parent=31 // pred_check_branch
          %195 = sbr.rel (%p193) target = $region44
        $region43: #{forward.1} parent=31 // pred_region
          %v196 = vld [vmem:[#allocation5] sm:$0xf]
          %v197 = vld [vmem:[#allocation5 + $0x4] sm:$0xf]
          %v198 = vld [vmem:[#allocation5 + $0x8] sm:$0xf]
          %v199 = vld [vmem:[#allocation5 + $0xc] sm:$0xf]
          %v200 = vld [vmem:[#allocation7] sm:$0xf]
          %v201 = vld [vmem:[#allocation7 + $0x4] sm:$0xf]
          %v202 = vld [vmem:[#allocation7 + $0x8] sm:$0xf]
          %v203 = vld [vmem:[#allocation7 + $0xc] sm:$0xf]
          %v204 = vld [vmem:[#allocation7 + $0x10] sm:$0xf]
          %v205 = vld [vmem:[#allocation7 + $0x14] sm:$0xf]
          %v206 = vld [vmem:[#allocation7 + $0x18] sm:$0xf]
          %v207 = vld [vmem:[#allocation7 + $0x1c] sm:$0xf]
          %v208 = vld [vmem:[#allocation7 + $0x20] sm:$0xf]
          %v209 = vld [vmem:[#allocation7 + $0x24] sm:$0xf]
          %v210 = vld [vmem:[#allocation7 + $0x28] sm:$0xf]
          %v211 = vld [vmem:[#allocation7 + $0x2c] sm:$0xf]
          %v212 = vld [vmem:[#allocation7 + $0x30] sm:$0xf]
          %v213 = vld [vmem:[#allocation7 + $0x34] sm:$0xf]
          %v214 = vld [vmem:[#allocation7 + $0x38] sm:$0xf]
          %v215 = vld [vmem:[#allocation7 + $0x3c] sm:$0xf]
          %v216 = vld [vmem:[%s3] sm:$0x1]
          %v218 = vperm.slane %v216, 0
          %v224 = vunpack.c.l.b16 %v196
          %v225 = vunpack.c.l.b16 %v197
          %v226 = vunpack.c.l.b16 %v198
          %v227 = vunpack.c.l.b16 %v199
          %v228 = vpack.c.b16 %v225, %v224
          %v229 = vpack.c.b16 %v227, %v226
          %v248 = vunpack.c.l.b16 %v200
          %v249 = vunpack.c.l.b16 %v201
          %v250 = vunpack.c.l.b16 %v202
          %v251 = vunpack.c.l.b16 %v203
          %v252 = vunpack.c.l.b16 %v204
          %v253 = vunpack.c.l.b16 %v205
          %v254 = vunpack.c.l.b16 %v206
          %v255 = vunpack.c.l.b16 %v207
          %v256 = vunpack.c.l.b16 %v208
          %v257 = vunpack.c.l.b16 %v209
          %v258 = vunpack.c.l.b16 %v210
          %v259 = vunpack.c.l.b16 %v211
          %v260 = vunpack.c.l.b16 %v212
          %v261 = vunpack.c.l.b16 %v213
          %v262 = vunpack.c.l.b16 %v214
          %v263 = vunpack.c.l.b16 %v215
          %v264 = vpack.c.b16 %v249, %v248
          %v265 = vpack.c.b16 %v251, %v250
          %v266 = vpack.c.b16 %v253, %v252
          %v267 = vpack.c.b16 %v255, %v254
          %v268 = vpack.c.b16 %v257, %v256
          %v269 = vpack.c.b16 %v259, %v258
          %v270 = vpack.c.b16 %v261, %v260
          %v271 = vpack.c.b16 %v263, %v262
          %280 = vmatpush.bf16.xpose.msra.mxu0 %v271
          %281 = vmatpush.bf16.xpose.msra.mxu0 %v270
          %282 = vmatpush.bf16.xpose.msra.mxu0 %v269
          %283 = vmatpush.bf16.xpose.msra.mxu0 %v268
          %284 = vmatpush.bf16.xpose.msra.mxu0 %v267
          %285 = vmatpush.bf16.xpose.msra.mxu0 %v266
          %286 = vmatpush.bf16.xpose.msra.mxu0 %v265
          %287 = vmatpush.bf16.xpose.msra.mxu0 %v264
          %288 = vmatmul.bf16.gmra.mxu0 %v228
          %v289 = vpop.f32.mrf.mxu0
          %v290 = vadd.f32 %v218, %v289
          %v291 = vpop.f32.mrf.mxu0
          %v292 = vadd.f32 %v218, %v291
          %293 = vmatmul.bf16.gmra.mxu0 %v229
          %v294 = vpop.f32.mrf.mxu0
          %v295 = vadd.f32 %v218, %v294
          %v296 = vpop.f32.mrf.mxu0
          %v297 = vadd.f32 %v218, %v296
          %298 = vdwg.mxu0
          %299 = vmax.xlane.f32.xlu0 %v290
          %v300 = vpop.xlane.xlu0 %299
          %301 = vmax.xlane.f32.xlu0 %v292
          %v302 = vpop.xlane.xlu0 %301
          %303 = vmax.xlane.f32.xlu0 %v295
          %v304 = vpop.xlane.xlu0 %303
          %305 = vmax.xlane.f32.xlu0 %v297
          %v306 = vpop.xlane.xlu0 %305
          %v307 = vsub.f32 %v290, %v300
          %v308 = vsub.f32 %v292, %v302
          %v309 = vsub.f32 %v295, %v304
          %v310 = vsub.f32 %v297, %v306
          %v311 = vmul.f32 %v307, 1.442695
          %v312 = vpow.pop %v311
          %v313 = vmul.f32 %v308, 1.442695
          %v314 = vpow.pop %v313
          %v315 = vmul.f32 %v309, 1.442695
          %v316 = vpow.pop %v315
          %v317 = vmul.f32 %v310, 1.442695
          %v318 = vpow.pop %v317
          %319 = vadd.xlane.f32.xlu0 %v312
          %v320 = vpop.xlane.xlu0 %319
          %321 = vadd.xlane.f32.xlu0 %v314
          %v322 = vpop.xlane.xlu0 %321
          %323 = vadd.xlane.f32.xlu0 %v316
          %v324 = vpop.xlane.xlu0 %323
          %325 = vadd.xlane.f32.xlu0 %v318
          %v326 = vpop.xlane.xlu0 %325
          %v327 = vrcp.pop %v320
          %v328 = vmul.f32 %v320, %v327
          %v329 = vsub.f32 1.0, %v328
          %v330 = vmul.f32 %v327, %v329
          %v331 = vadd.f32 %v327, %v330
          %vm332 = vweird.f32 %v320
          %vm333 = vweird.f32 %v327
          %vm334 = vmor %vm332, %vm333
          %v335 = vsel %vm334, %v327, %v331
          %v336 = vand.u32 2147483647, %v320
          %vm337 = vcmp.eq.f32.partialorder %v336, 8.507059e+37
          %v338 = vand.u32 %v320, 2147483648
          %v339 = vor.u32 1.1754944e-38, %v338
          %v340 = vsel %vm337, %v339, %v335
          %v341 = vmul.f32 %v312, %v340
          %v342 = vrcp.pop %v322
          %v343 = vmul.f32 %v322, %v342
          %v344 = vsub.f32 1.0, %v343
          %v345 = vmul.f32 %v342, %v344
          %v346 = vadd.f32 %v342, %v345
          %vm347 = vweird.f32 %v322
          %vm348 = vweird.f32 %v342
          %vm349 = vmor %vm347, %vm348
          %v350 = vsel %vm349, %v342, %v346
          %v351 = vand.u32 2147483647, %v322
          %vm352 = vcmp.eq.f32.partialorder %v351, 8.507059e+37
          %v353 = vand.u32 %v322, 2147483648
          %v354 = vor.u32 1.1754944e-38, %v353
          %v355 = vsel %vm352, %v354, %v350
          %v356 = vmul.f32 %v314, %v355
          %v357 = vrcp.pop %v324
          %v358 = vmul.f32 %v324, %v357
          %v359 = vsub.f32 1.0, %v358
          %v360 = vmul.f32 %v357, %v359
          %v361 = vadd.f32 %v357, %v360
          %vm362 = vweird.f32 %v324
          %vm363 = vweird.f32 %v357
          %vm364 = vmor %vm362, %vm363
          %v365 = vsel %vm364, %v357, %v361
          %v366 = vand.u32 2147483647, %v324
          %vm367 = vcmp.eq.f32.partialorder %v366, 8.507059e+37
          %v368 = vand.u32 %v324, 2147483648
          %v369 = vor.u32 1.1754944e-38, %v368
          %v370 = vsel %vm367, %v369, %v365
          %v371 = vmul.f32 %v316, %v370
          %v372 = vrcp.pop %v326
          %v373 = vmul.f32 %v326, %v372
          %v374 = vsub.f32 1.0, %v373
          %v375 = vmul.f32 %v372, %v374
          %v376 = vadd.f32 %v372, %v375
          %vm377 = vweird.f32 %v326
          %vm378 = vweird.f32 %v372
          %vm379 = vmor %vm377, %vm378
          %v380 = vsel %vm379, %v372, %v376
          %v381 = vand.u32 2147483647, %v326
          %vm382 = vcmp.eq.f32.partialorder %v381, 8.507059e+37
          %v383 = vand.u32 %v326, 2147483648
          %v384 = vor.u32 1.1754944e-38, %v383
          %v385 = vsel %vm382, %v384, %v380
          %v386 = vmul.f32 %v318, %v385
          %387 = vst [vmem:[#allocation2] sm:$0xff] %v341
          %388 = vst [vmem:[#allocation2 + $0x8] sm:$0xff] %v356
          %389 = vst [vmem:[#allocation2 + $0x10] sm:$0xff] %v371
          %390 = vst [vmem:[#allocation2 + $0x18] sm:$0xff] %v386
        $region44: #{forward.1} parent=31 // pred_fallthru
          _
        %s391 = smul.u32 %s25, 8
        %s392 = sld [smem:[#allocation4 + %s391]]
        %s393 = scalar_lea.vmem [#allocation2], %s392
        %v394 = vld [vmem:[%s393] sm:$0x1]
        %s395 = sadd.s32 %s391, 1
        %s396 = sld [smem:[#allocation4 + %s395]]
        %s397 = scalar_lea.vmem [#allocation2], %s396
        %v398 = vld [vmem:[%s397] sm:$0x1]
        %s399 = sadd.s32 %s391, 2
        %s400 = sld [smem:[#allocation4 + %s399]]
        %s401 = scalar_lea.vmem [#allocation2], %s400
        %v402 = vld [vmem:[%s401] sm:$0x1]
        %s403 = sadd.s32 %s391, 3
        %s404 = sld [smem:[#allocation4 + %s403]]
        %s405 = scalar_lea.vmem [#allocation2], %s404
        %v406 = vld [vmem:[%s405] sm:$0x1]
        %s407 = sadd.s32 %s391, 4
        %s408 = sld [smem:[#allocation4 + %s407]]
        %s409 = scalar_lea.vmem [#allocation2], %s408
        %v410 = vld [vmem:[%s409] sm:$0x1]
        %s411 = sadd.s32 %s391, 5
        %s412 = sld [smem:[#allocation4 + %s411]]
        %s413 = scalar_lea.vmem [#allocation2], %s412
        %v414 = vld [vmem:[%s413] sm:$0x1]
        %s415 = sadd.s32 %s391, 6
        %s416 = sld [smem:[#allocation4 + %s415]]
        %s417 = scalar_lea.vmem [#allocation2], %s416
        %v418 = vld [vmem:[%s417] sm:$0x1]
        %s419 = sadd.s32 %s391, 7
        %s420 = sld [smem:[#allocation4 + %s419]]
        %s421 = scalar_lea.vmem [#allocation2], %s420
        %v422 = vld [vmem:[%s421] sm:$0x1]
        %v424 = vrot.slane %v398, 7
        %v427 = vrot.slane %v402, 6
        %v430 = vrot.slane %v406, 5
        %v433 = vrot.slane %v410, 4
        %v436 = vrot.slane %v414, 3
        %v439 = vrot.slane %v418, 2
        %v442 = vrot.slane %v422, 1
        %vm444 = vcmask 1040384
        %v445 = vsel %vm444, %v394, %v424
        %vm446 = vcmask 1041408
        %v447 = vsel %vm446, %v445, %v427
        %vm448 = vcmask 1042432
        %v449 = vsel %vm448, %v447, %v430
        %vm450 = vcmask 1043456
        %v451 = vsel %vm450, %v449, %v433
        %vm452 = vcmask 1044480
        %v453 = vsel %vm452, %v451, %v436
        %vm454 = vcmask 1045504
        %v455 = vsel %vm454, %v453, %v439
        %vm456 = vcmask 1046528
        %v457 = vsel %vm456, %v455, %v442
        %458 = vst [vmem:[%s191] sm:$0xff] %v457
        %p459 = scmp.lt.s32.totalorder %s25, 1
        %s460 = scalar_select %p459, %s25, 1
        %s461 = smul.addr %s460, 8
        %s462 = scalar_lea.vmem %s4, %s461
        // Predicated region
        $region45: #{forward.1} parent=31 // pred_check
          %p463 = pneg %p106
        $region46: #{forward.1} parent=31 // pred_check_branch
          %465 = sbr.rel (%p463) target = $region48
        $region47: #{forward.1} parent=31 // pred_region
          _
        $region48: #{forward.1} parent=31 // pred_fallthru
          _
      $region32: #{forward.1} parent=5 // pred_fallthru
        _
      %p466 = scmp.le.s32.totalorder 2, %s20
      // Predicated region
      $region49: #{forward.1} parent=5 // pred_check
        %p467 = pneg %p466
      $region50: #{forward.1} parent=5 // pred_check_branch
        %469 = sbr.rel (%p467) target = $region52
      $region51: #{forward.1} parent=5 // pred_region
        %s470 = ssub.s32 %s20, 2
        // Predicated region
        $region53: #{forward.1} parent=51 // pred_check
          %p471 = pneg %p112
        $region54: #{forward.1} parent=51 // pred_check_branch
          %473 = sbr.rel (%p471) target = $region56
        $region55: #{forward.1} parent=51 // pred_region
          %p474 = scmp.lt.s32.totalorder %s26, 1
          %s475 = scalar_select %p474, %s26, 1
          %s476 = smul.addr %s475, 8
          %s477 = scalar_lea.vmem %s4, %s476
        $region56: #{forward.1} parent=51 // pred_fallthru
          _
      $region52: #{forward.1} parent=5 // pred_fallthru
        _
    $region6: #{forward.1} parent=1 // loop_footer
      %s24 = sadd.s32 1, %s20
    $region7: #{forward.1} parent=1 // loop_footer_branch
      %19 = sbr.rel target = $region3
    $region8: #{forward.1} parent=1 // loop_exit
      _
    %478 = vsyncpa [#allocation6], 1
    %s479 = scalar_lea.sflag [#allocation6], 1
    %480 = vsyncpa %s479, 1
    %481 = vsyncpa [#allocation8], 1

</llo_original>
